<compile_context>
chip_gen: v5e
topology: v5e:2x2
jax: 0.10.0
libtpu: 0.0.40
codegen_flags: <defaults>
</compile_context>

<pallas_src>
import functools

import jax
import jax.numpy as jnp
from jax.experimental import pallas as pl
from jax.experimental.pallas import tpu as pltpu


def dfc_forward_kernel(x_ref, w_ref, b_ref, o_ref, acc_ref):
    # x_ref : (tm, tk)  VMEM   activation tile
    # w_ref : (tn, tk)  VMEM   weight tile in native (OUT, IN) layout
    # b_ref : (1,  tn)  VMEM   bias tile
    # o_ref : (tm, tn)  VMEM   output tile (resident across the K axis)
    # acc_ref: (tm, tn) f32 VMEM scratch accumulator
    k = pl.program_id(2)

    @pl.when(k == 0)
    def _init():
        # Fold the bias add into the accumulator init (one-time, not per-K).
        acc_ref[...] = jnp.broadcast_to(
            b_ref[...].astype(jnp.float32), acc_ref.shape)

    # Contract x (tm, tk) with w (tn, tk) over their last dims -> (tm, tn).
    acc_ref[...] += jax.lax.dot_general(
        x_ref[...], w_ref[...],
        dimension_numbers=(((1,), (1,)), ((), ())),
        preferred_element_type=jnp.float32)

    @pl.when(k == pl.num_programs(2) - 1)
    def _finalize():
        # ReLU + downcast only once, in the epilogue.
        o_ref[...] = jnp.maximum(acc_ref[...], 0.0).astype(o_ref.dtype)


def _round_up(x, m):
    return ((x + m - 1) // m) * m


@functools.partial(jax.jit, static_argnames=("tm", "tn", "tk", "compute_dtype"))
def dfc_layer_forward(x, weights, bias, *, tm=256, tn=512, tk=512,
                      compute_dtype=None):
    """Pallas equivalent of DFC_layer.forward: ReLU(x @ weights.T + bias).

    x:       (B, in_features)
    weights: (out_features, in_features)   (PyTorch nn.Linear layout; NOT transposed)
    bias:    (out_features,)
    compute_dtype: optionally cast x/weights (e.g. jnp.bfloat16 on v6e/v7x);
                   accumulation stays in float32 either way.
    """
    B, IN = x.shape
    OUT, IN_w = weights.shape
    assert IN == IN_w, (IN, IN_w)
    out_dtype = x.dtype

    if compute_dtype is not None:
        x = x.astype(compute_dtype)
        weights = weights.astype(compute_dtype)

    # Clamp tile sizes to the (8,128)-aligned padded problem dims.
    tm = min(tm, _round_up(B, 8))
    tn = min(tn, _round_up(OUT, 128))
    tk = min(tk, _round_up(IN, 128))

    Mp = _round_up(B, tm)
    Np = _round_up(OUT, tn)
    Kp = _round_up(IN, tk)

    # Zero-pad to tile multiples (padded K contributes 0 to the dot; padded
    # M/N rows/cols are sliced off after the call).  Keeps output stores
    # lane-dense (tn multiple of 128 -> unmasked vst).
    if (Mp, Kp) != (B, IN):
        x = jnp.pad(x, ((0, Mp - B), (0, Kp - IN)))
    if (Np, Kp) != (OUT, IN):
        weights = jnp.pad(weights, ((0, Np - OUT), (0, Kp - IN)))
    if Np != OUT:
        bias = jnp.pad(bias, (0, Np - OUT))
    bias2d = bias.reshape(1, Np).astype(jnp.float32)

    grid = (Mp // tm, Np // tn, Kp // tk)

    out = pl.pallas_call(
        dfc_forward_kernel,
        out_shape=jax.ShapeDtypeStruct((Mp, Np), out_dtype),
        grid_spec=pltpu.PrefetchScalarGridSpec(
            num_scalar_prefetch=0,
            grid=grid,
            in_specs=[
                pl.BlockSpec((tm, tk), lambda i, j, k: (i, k)),   # x tile
                pl.BlockSpec((tn, tk), lambda i, j, k: (j, k)),   # W tile (OUT,IN)
                pl.BlockSpec((1, tn), lambda i, j, k: (0, j)),    # bias tile
            ],
            out_specs=pl.BlockSpec((tm, tn), lambda i, j, k: (i, j)),
            scratch_shapes=[pltpu.VMEM((tm, tn), jnp.float32)],
        ),
        compiler_params=pltpu.CompilerParams(
            dimension_semantics=("parallel", "parallel", "arbitrary"),
        ),
    )(x, weights, bias2d)

    if (Mp, Np) != (B, OUT):
        out = out[:B, :OUT]
    return out


if __name__ == "__main__":
    key = jax.random.PRNGKey(0)
    k_x, k_w, k_b = jax.random.split(key, 3)

    batch = 8
    in_features = 32
    out_features = 64

    # Deterministic parameter init mirroring the PyTorch module:
    #   kaiming_normal_ on weights -> N(0, sqrt(2 / fan_in))
    #   nn.Linear default bias init -> U(-1/sqrt(fan_in), 1/sqrt(fan_in))
    std = jnp.sqrt(2.0 / in_features)
    weights = std * jax.random.normal(k_w, (out_features, in_features), jnp.float32)
    bound = 1.0 / jnp.sqrt(jnp.float32(in_features))
    bias = jax.random.uniform(k_b, (out_features,), jnp.float32, -bound, bound)

    x = jax.random.normal(k_x, (batch, in_features), jnp.float32)

    out = dfc_layer_forward(x, weights, bias)
    out = jax.block_until_ready(out)

    # Pure-JAX reference (same semantics as torch.matmul(x, W.t()) + bias, ReLU)
    ref = jnp.maximum(x @ weights.T + bias[None, :], 0.0)
    assert out.shape == (batch, out_features)
    assert jnp.allclose(out, ref, atol=1e-5, rtol=1e-5)

    # TODO(synk): DFC_layer.backward() implements a custom (non-autograd)
    # feedback-control update and stashes self.activations / linear_activations;
    # only the forward pass is implemented here.

    print("KERNEL_OK")
</pallas_src>

<mosaic_0001>
module attributes {stable_mosaic.version = 11 : i64} {
  func.func @dfc_forward_kernel(%arg0: i32, %arg1: i32, %arg2: i32, %arg3: memref<8x128xf32, #tpu.memory_space<vmem>>, %arg4: memref<128x128xf32, #tpu.memory_space<vmem>>, %arg5: memref<1x128xf32, #tpu.memory_space<vmem>>, %arg6: memref<8x128xf32, #tpu.memory_space<vmem>>, %arg7: memref<8x128xf32, #tpu.memory_space<vmem>>) attributes {dimension_semantics = [#tpu.dimension_semantics<parallel>, #tpu.dimension_semantics<parallel>, #tpu.dimension_semantics<arbitrary>], iteration_bounds = array<i64: 1, 1, 1>, scalar_prefetch = 0 : i64, scratch_operands = 1 : i64, tpu.core_type = #tpu.core_type<tc>, window_params = [{transform_indices = @transform_0, window_bounds = array<i64: 8, 128>}, {transform_indices = @transform_1, window_bounds = array<i64: 128, 128>}, {transform_indices = @transform_2, window_bounds = array<i64: 1, 128>}, {transform_indices = @transform_3, window_bounds = array<i64: 8, 128>}]} {
    %c0_i32 = arith.constant 0 : i32
    %0 = arith.cmpi eq, %arg2, %c0_i32 : i32
    %1 = arith.extui %0 : i1 to i32
    %c0_i32_0 = arith.constant 0 : i32
    %2 = arith.cmpi ne, %1, %c0_i32_0 : i32
    scf.if %2 {
      %c0_10 = arith.constant 0 : index
      %c0_11 = arith.constant 0 : index
      %12 = vector.load %arg5[%c0_10, %c0_11] : memref<1x128xf32, #tpu.memory_space<vmem>>, vector<1x128xf32>
      %13 = vector.shape_cast %12 : vector<1x128xf32> to vector<1x128xf32>
      %14 = vector.broadcast %13 : vector<1x128xf32> to vector<8x128xf32>
      %c0_12 = arith.constant 0 : index
      %c0_13 = arith.constant 0 : index
      %15 = vector.load %arg7[%c0_12, %c0_13] : memref<8x128xf32, #tpu.memory_space<vmem>>, vector<8x128xf32>
      tpu.vector_store %arg7[%c0_12, %c0_13], %14 {strides = array<i32>} : memref<8x128xf32, #tpu.memory_space<vmem>>, vector<8x128xf32>,
    } else {
    }
    %c0 = arith.constant 0 : index
    %c0_1 = arith.constant 0 : index
    %3 = vector.load %arg7[%c0, %c0_1] : memref<8x128xf32, #tpu.memory_space<vmem>>, vector<8x128xf32>
    %c0_2 = arith.constant 0 : index
    %c0_3 = arith.constant 0 : index
    %4 = vector.load %arg3[%c0_2, %c0_3] : memref<8x128xf32, #tpu.memory_space<vmem>>, vector<8x128xf32>
    %c0_4 = arith.constant 0 : index
    %c0_5 = arith.constant 0 : index
    %5 = vector.load %arg4[%c0_4, %c0_5] : memref<128x128xf32, #tpu.memory_space<vmem>>, vector<128x128xf32>
    %cst = arith.constant dense<0.000000e+00> : vector<8x128xf32>
    %6 = tpu.matmul %4, %5, %cst {dimension_numbers = #tpu.dot_dimension_numbers<[1], [1], [0], [0], [0, 0, 1, 0], [], []>} : vector<8x128xf32>, vector<128x128xf32>, vector<8x128xf32> -> vector<8x128xf32>
    %7 = arith.addf %3, %6 : vector<8x128xf32>
    %c0_6 = arith.constant 0 : index
    %c0_7 = arith.constant 0 : index
    %8 = vector.load %arg7[%c0_6, %c0_7] : memref<8x128xf32, #tpu.memory_space<vmem>>, vector<8x128xf32>
    tpu.vector_store %arg7[%c0_6, %c0_7], %7 {strides = array<i32>} : memref<8x128xf32, #tpu.memory_space<vmem>>, vector<8x128xf32>,
    %c0_i32_8 = arith.constant 0 : i32
    %9 = arith.cmpi eq, %arg2, %c0_i32_8 : i32
    %10 = arith.extui %9 : i1 to i32
    %c0_i32_9 = arith.constant 0 : i32
    %11 = arith.cmpi ne, %10, %c0_i32_9 : i32
    scf.if %11 {
      %c0_10 = arith.constant 0 : index
      %c0_11 = arith.constant 0 : index
      %12 = vector.load %arg7[%c0_10, %c0_11] : memref<8x128xf32, #tpu.memory_space<vmem>>, vector<8x128xf32>
      %cst_12 = arith.constant 0.000000e+00 : f32
      %13 = vector.broadcast %cst_12 : f32 to vector<8x128xf32>
      %14 = arith.maximumf %12, %13 : vector<8x128xf32>
      %c0_13 = arith.constant 0 : index
      %c0_14 = arith.constant 0 : index
      %15 = vector.load %arg6[%c0_13, %c0_14] : memref<8x128xf32, #tpu.memory_space<vmem>>, vector<8x128xf32>
      tpu.vector_store %arg6[%c0_13, %c0_14], %14 {strides = array<i32>} : memref<8x128xf32, #tpu.memory_space<vmem>>, vector<8x128xf32>,
    } else {
    }
    return
  }
  func.func @transform_0(%arg0: i32, %arg1: i32, %arg2: i32) -> (i32, i32) {
    %c0_i32 = arith.constant 0 : i32
    return %arg0, %arg2 : i32, i32
  }
  func.func @transform_1(%arg0: i32, %arg1: i32, %arg2: i32) -> (i32, i32) {
    %c0_i32 = arith.constant 0 : i32
    return %arg1, %arg2 : i32, i32
  }
  func.func @transform_2(%arg0: i32, %arg1: i32, %arg2: i32) -> (i32, i32) {
    %c0_i32 = arith.constant 0 : i32
    %c0_i32_0 = arith.constant 0 : i32
    return %c0_i32, %arg1 : i32, i32
  }
  func.func @transform_3(%arg0: i32, %arg1: i32, %arg2: i32) -> (i32, i32) {
    %c0_i32 = arith.constant 0 : i32
    return %arg0, %arg1 : i32, i32
  }
}

</mosaic_0001>

<llo_original>
// kernel: dfc_layer_forward.1
$region0: #{dfc_layer_forward.1}
  #allocation0 [shape = 'u32[]', space=smem, size = 0x4, offset = 0x4, fixed_abs, tag = 'smem constant byte address 0x4 - core index']
  #allocation1 [shape = 'u32[72,128]{1,0:T(1,128)}', space=vmem, size = 0x9000, scoped, tag = 'internal scratch']
  #allocation2 [shape = 'f32[8,128]{1,0:T(8,128)}', space=vmem, size = 0x1000, scoped, tag = 'scratch operand']
  %s0 = inlined_call_operand.vmem [shape: f32[8,128], index: 0, kind: input, shape index: {}]
  %s1 = inlined_call_operand.vmem [shape: f32[128,128], index: 1, kind: input, shape index: {}]
  %s2 = inlined_call_operand.vmem [shape: f32[1,128], index: 2, kind: input, shape index: {}]
  %s3 = inlined_call_operand.hbm [shape: f32[8,128], index: 3, kind: output, shape index: {}]
  %s4 = sld [smem:[#allocation0]]
  $region30: #{dfc_layer_forward.1} parent=0
    _
  %s6 = ssub.s32 1, %s4
  %s7 = scalar_select 0, %s6, %s4
  $region1: #{dfc_layer_forward.1} parent=0
    #allocation3 [shape = 'u8[4096]{0}', space=vmem, size = 0x1000, scoped, tag = 'output window, operand 0, single buffered']
    #allocation4 [shape = 's32[1]{0}', space=sflag, size = 0x4, scoped, tag = 'scoped memory for dfc_layer_forward.1']
    %8 = vsyncpa [#allocation4], 0
    // Predicated region
    $region2: #{dfc_layer_forward.1} parent=1 // pred_check
      _
    $region3: #{dfc_layer_forward.1} parent=1 // pred_check_branch
      %10 = sbr.rel (0) target = $region5
    $region4: #{dfc_layer_forward.1} parent=1 // pred_region
      _
    $region5: #{dfc_layer_forward.1} parent=1 // pred_fallthru
      _
    // Predicated region
    $region6: #{dfc_layer_forward.1} parent=1 // pred_check
      _
    $region7: #{dfc_layer_forward.1} parent=1 // pred_check_branch
      %12 = sbr.rel (0) target = $region9
    $region8: #{dfc_layer_forward.1} parent=1 // pred_region
      _
    $region9: #{dfc_layer_forward.1} parent=1 // pred_fallthru
      _
    // Predicated region
    $region10: #{dfc_layer_forward.1} parent=1 // pred_check
      _
    $region11: #{dfc_layer_forward.1} parent=1 // pred_check_branch
      %14 = sbr.rel (0) target = $region13
    $region12: #{dfc_layer_forward.1} parent=1 // pred_region
      _
    $region13: #{dfc_layer_forward.1} parent=1 // pred_fallthru
      _
    %p15 = scmp.eq.s32.totalorder 0, 0
    // Predicated region
    $region14: #{dfc_layer_forward.1} parent=1 // pred_check
      %p16 = pneg %p15
    $region15: #{dfc_layer_forward.1} parent=1 // pred_check_branch
      %18 = sbr.rel (%p16) target = $region17
    $region16: #{dfc_layer_forward.1} parent=1 // pred_region
      %v19 = vld [vmem:[%s2] sm:$0x1]
      %v21 = vperm.slane %v19, 0
      %23 = vst [vmem:[#allocation2] sm:$0xff] %v21
    $region17: #{dfc_layer_forward.1} parent=1 // pred_fallthru
      _
    %v24 = vld [vmem:[#allocation2] sm:$0xff]
    %v25 = vld [vmem:[%s0] sm:$0xff]
    %v26 = vld [vmem:[%s1] sm:$0xff]
    %v27 = vld [vmem:[%s1 + $0x8] sm:$0xff]
    %v28 = vld [vmem:[%s1 + $0x10] sm:$0xff]
    %v29 = vld [vmem:[%s1 + $0x18] sm:$0xff]
    %v30 = vld [vmem:[%s1 + $0x20] sm:$0xff]
    %v31 = vld [vmem:[%s1 + $0x28] sm:$0xff]
    %v32 = vld [vmem:[%s1 + $0x30] sm:$0xff]
    %v33 = vld [vmem:[%s1 + $0x38] sm:$0xff]
    %v34 = vld [vmem:[%s1 + $0x40] sm:$0xff]
    %v35 = vld [vmem:[%s1 + $0x48] sm:$0xff]
    %v36 = vld [vmem:[%s1 + $0x50] sm:$0xff]
    %v37 = vld [vmem:[%s1 + $0x58] sm:$0xff]
    %v38 = vld [vmem:[%s1 + $0x60] sm:$0xff]
    %v39 = vld [vmem:[%s1 + $0x68] sm:$0xff]
    %v40 = vld [vmem:[%s1 + $0x70] sm:$0xff]
    %v41 = vld [vmem:[%s1 + $0x78] sm:$0xff]
    %42 = vmatpush.xpose.msra.mxu0 %v41
    %43 = vmatpush.xpose.msra.mxu0 %v40
    %44 = vmatpush.xpose.msra.mxu0 %v39
    %45 = vmatpush.xpose.msra.mxu0 %v38
    %46 = vmatpush.xpose.msra.mxu0 %v37
    %47 = vmatpush.xpose.msra.mxu0 %v36
    %48 = vmatpush.xpose.msra.mxu0 %v35
    %49 = vmatpush.xpose.msra.mxu0 %v34
    %50 = vmatpush.xpose.msra.mxu0 %v33
    %51 = vmatpush.xpose.msra.mxu0 %v32
    %52 = vmatpush.xpose.msra.mxu0 %v31
    %53 = vmatpush.xpose.msra.mxu0 %v30
    %54 = vmatpush.xpose.msra.mxu0 %v29
    %55 = vmatpush.xpose.msra.mxu0 %v28
    %56 = vmatpush.xpose.msra.mxu0 %v27
    %57 = vmatpush.xpose.msra.mxu0 %v26
    %58 = vmatmul.f32.gmra.mxu0 %v25
    %v59 = vpop.f32.mrf.mxu0
    %v60 = vadd.f32 0.0, %v59
    %61 = vdwg.mxu0
    %v62 = vadd.f32 %v24, %v60
    %63 = vst [vmem:[#allocation2] sm:$0xff] %v62
    // Predicated region
    $region18: #{dfc_layer_forward.1} parent=1 // pred_check
      %p64 = pneg %p15
    $region19: #{dfc_layer_forward.1} parent=1 // pred_check_branch
      %66 = sbr.rel (%p64) target = $region21
    $region20: #{dfc_layer_forward.1} parent=1 // pred_region
      %v67 = vld [vmem:[#allocation2] sm:$0xff]
      %v68 = vmax.f32 %v67, 0.0
      %69 = vst [vmem:[#allocation3] sm:$0xff] %v68
    $region21: #{dfc_layer_forward.1} parent=1 // pred_fallthru
      _
    // Predicated region
    $region22: #{dfc_layer_forward.1} parent=1 // pred_check
      _
    $region23: #{dfc_layer_forward.1} parent=1 // pred_check_branch
      %71 = sbr.rel (0) target = $region25
    $region24: #{dfc_layer_forward.1} parent=1 // pred_region
      %73 = vsyncadd [#allocation4], 0
      %s75 = sshll.u32 [#allocation3], 4
      %s76 = int_to_ptr.vmem [resolvable:$true] %s75
      %s77 = sshll.u32 %s3, 4
      %s78 = int_to_ptr.hbm [resolvable:$true] %s77
      %80 = dma.vmem_to_hbm [thread:$0]  %s76, 128, %s78, [#allocation4]
    $region25: #{dfc_layer_forward.1} parent=1 // pred_fallthru
      _
    // Predicated region
    $region26: #{dfc_layer_forward.1} parent=1 // pred_check
      _
    $region27: #{dfc_layer_forward.1} parent=1 // pred_check_branch
      %82 = sbr.rel (0) target = $region29
    $region28: #{dfc_layer_forward.1} parent=1 // pred_region
      %84 = dma.done [#allocation4], 128
    $region29: #{dfc_layer_forward.1} parent=1 // pred_fallthru
      _
    %85 = vsyncpa [#allocation4], 1

</llo_original>
